<compile_context>
chip_gen: v5e
topology: v5e:2x2
jax: 0.10.0
libtpu: 0.0.40
codegen_flags: <defaults>
</compile_context>

<pallas_src>
import jax
import jax.numpy as jnp
from jax.experimental import pallas as pl
from jax.experimental.pallas import tpu as pltpu


# Rows of the per-batch partial-sum output slab: [l1_sum, h_tv, w_tv, c_tv].
_ROW_L1, _ROW_H, _ROW_W, _ROW_C = 0, 1, 2, 3
_N_ROWS = 4


def _make_kernel(spatial_tv, spectral_tv, has_carry, use_roll):
    """Build a kernel body specialized on the static flag combination."""

    def body(y_ref, gt_ref, out_ref, carry_ref):
        # y_ref / gt_ref : (C, TH, W) blocks (batch dim squeezed out)
        # out_ref        : (4, W) f32 per-batch per-lane partial sums (resident
        #                  across the H grid axis -> accumulator)
        # carry_ref      : (C, W) f32 last row of the previous H tile (optional)
        h = pl.program_id(1)
        C = y_ref.shape[0]

        @pl.when(h == 0)
        def _init():
            out_ref[...] = jnp.zeros_like(out_ref)

        # Up-cast in-kernel; inputs are DMA'd in their native dtype.
        y = y_ref[...].astype(jnp.float32)          # (C, TH, W)

        def acc(row, vec_w):                        # vec_w: (W,) per-lane partial
            out_ref[pl.ds(row, 1), :] += vec_w[None, :]

        # ---- L1 fidelity numerator (mean is taken in the wrapper) -----------
        gt = gt_ref[...].astype(jnp.float32)
        acc(_ROW_L1, jnp.sum(jnp.abs(y - gt), axis=(0, 1)))

        # ---- Spatial TV ------------------------------------------------------
        if spatial_tv:
            TH, W = y.shape[1], y.shape[2]

            # H direction (sublane axis): in-tile diffs.
            if TH > 1:
                if use_roll:
                    # y_up[:, i, :] = y[:, i-1, :]; mask the wrapped row 0.
                    y_up = pltpu.roll(y, shift=1, axis=1)
                    row_i = jax.lax.broadcasted_iota(jnp.int32, y.shape, 1)
                    dh = jnp.where(row_i > 0, y - y_up, 0.0)
                else:
                    dh = y[:, 1:, :] - y[:, :-1, :]
                acc(_ROW_H, jnp.sum(dh * dh, axis=(0, 1)))

            # ... plus the diff across the H-tile boundary (carried row).
            if has_carry:
                @pl.when(h > 0)
                def _boundary():
                    db = y[:, 0, :] - carry_ref[...]
                    acc(_ROW_H, jnp.sum(db * db, axis=0))
                carry_ref[...] = y[:, TH - 1, :]

            # W direction (lane axis): fully in-tile (W is not tiled).
            if W > 1:
                if use_roll:
                    y_lf = pltpu.roll(y, shift=1, axis=2)
                    lane_i = jax.lax.broadcasted_iota(jnp.int32, y.shape, 2)
                    dw = jnp.where(lane_i > 0, y - y_lf, 0.0)
                    acc(_ROW_W, jnp.sum(dw * dw, axis=(0, 1)))
                else:
                    dw = y[:, :, 1:] - y[:, :, :-1]
                    pw = jnp.sum(dw * dw, axis=(0, 1))           # (W-1,)
                    out_ref[pl.ds(_ROW_W, 1), pl.ds(0, W - 1)] += pw[None, :]

        # ---- Spectral TV (C is the major axis: offset-1 slices stay aligned) -
        if spectral_tv and C > 1:
            dc = y[1:, :, :] - y[:-1, :, :]
            acc(_ROW_C, jnp.sum(dc * dc, axis=(0, 1)))

    if has_carry:
        def kernel(y_ref, gt_ref, out_ref, carry_ref):
            body(y_ref, gt_ref, out_ref, carry_ref)
    else:
        def kernel(y_ref, gt_ref, out_ref):
            body(y_ref, gt_ref, out_ref, None)
    return kernel


def _vmem_capacity_bytes():
    try:
        return int(pltpu.get_tpu_info().vmem_capacity_bytes)
    except Exception:
        return 64 * 1024 * 1024       # conservative (v7x-sized) default


def _pick_tile_h(H, C, W, itemsize, budget_bytes):
    """Largest H tile (divisor of H, dtype-aware sublane alignment) whose
    2 inputs x 2 pipeline buffers of raw blocks stay within budget_bytes."""
    sub = {4: 8, 2: 16, 1: 32}.get(itemsize, 8)   # f32 / bf16 / int8-fp8 packing

    def fits(th):
        return 4 * C * th * W * itemsize <= budget_bytes

    if fits(H):
        return H
    for th in range(H - 1, 0, -1):
        if H % th == 0 and th % sub == 0 and fits(th):
            return th
    # TODO(synk): pad H (or mask a partial trailing tile) instead of falling
    # back to whole-H blocks when H has no aligned divisor under budget.
    return H


def _hybrid_loss_sums(y, gt, spatial_tv, spectral_tv, tile_h=None):
    B, C, H, W = y.shape
    itemsize = jnp.dtype(y.dtype).itemsize

    # Generation-aware VMEM budgets (raw-block budget leaves headroom for the
    # in-kernel f32 upcasts / TV temporaries, which shrink when TV is off).
    cap = _vmem_capacity_bytes()
    n_tv = int(bool(spatial_tv)) + int(bool(spectral_tv))
    if cap >= (96 << 20):              # v5e / v6e: 128 MiB physical VMEM
        budget = (24 << 20) if n_tv == 0 else (16 << 20)
        vmem_limit = 64 << 20
    else:                              # v7x: 64 MiB physical (or unknown)
        budget = (12 << 20) if n_tv == 0 else (8 << 20)
        vmem_limit = 44 << 20

    if tile_h is None:
        tile_h = _pick_tile_h(H, C, W, itemsize, budget)
    assert H % tile_h == 0, (H, tile_h)
    grid_h = H // tile_h

    has_carry = bool(spatial_tv) and grid_h > 1
    # roll+mask only pays off (and is only used) on vreg-aligned blocks;
    # otherwise keep plain slice diffs.
    use_roll = (W % 128 == 0) and (tile_h % 8 == 0)

    in_blk = pl.BlockSpec((None, C, tile_h, W), lambda b, h: (b, 0, h, 0))
    out_blk = pl.BlockSpec((None, _N_ROWS, W), lambda b, h: (b, 0, 0))

    scratch = []
    if has_carry:
        scratch.append(pltpu.VMEM((C, W), jnp.float32))   # carried last row

    kernel = _make_kernel(bool(spatial_tv), bool(spectral_tv), has_carry, use_roll)

    return pl.pallas_call(
        kernel,
        out_shape=jax.ShapeDtypeStruct((B, _N_ROWS, W), jnp.float32),
        grid_spec=pltpu.PrefetchScalarGridSpec(
            num_scalar_prefetch=0,
            grid=(B, grid_h),
            in_specs=[in_blk, in_blk],
            out_specs=out_blk,
            scratch_shapes=scratch,
        ),
        compiler_params=pltpu.CompilerParams(
            # Batches are independent -> parallel (lets v7x's 2 TCs split B);
            # the H axis carries the per-batch accumulator -> arbitrary.
            dimension_semantics=("parallel", "arbitrary"),
            vmem_limit_bytes=vmem_limit,
        ),
    )(y, gt)


def hybrid_loss(y, gt, lamd=0.1, spatial_tv=False, spectral_tv=False, tile_h=None):
    """JAX/Pallas equivalent of HybridLoss(lamd, spatial_tv, spectral_tv)(y, gt)."""
    del lamd  # stored but unused in the PyTorch forward
    B, C, H, W = y.shape
    sums = _hybrid_loss_sums(y, gt, spatial_tv, spectral_tv, tile_h)  # (B, 4, W) f32

    total = jnp.sum(sums[:, _ROW_L1, :]) / (B * C * H * W)   # L1Loss (mean reduction)
    if spatial_tv:
        # NOTE: divides by zero when H == 1 or W == 1, mirroring the PyTorch module.
        h_tv = jnp.sum(sums[:, _ROW_H, :])
        w_tv = jnp.sum(sums[:, _ROW_W, :])
        count_h = C * (H - 1) * W
        count_w = C * H * (W - 1)
        total = total + 0.001 * (h_tv / count_h + w_tv / count_w) / B
    if spectral_tv:
        c_tv = jnp.sum(sums[:, _ROW_C, :])
        count_c = (C - 1) * H * W
        total = total + 0.001 * 2.0 * (c_tv / count_c) / B
    return total


def _reference(y, gt, spatial_tv=False, spectral_tv=False):
    # Pure-JAX reference of the same forward, for a sanity check.
    B, C, H, W = y.shape
    y32 = y.astype(jnp.float32)
    g32 = gt.astype(jnp.float32)
    total = jnp.mean(jnp.abs(y32 - g32))
    if spatial_tv:
        h_tv = jnp.sum((y32[:, :, 1:, :] - y32[:, :, :-1, :]) ** 2)
        w_tv = jnp.sum((y32[:, :, :, 1:] - y32[:, :, :, :-1]) ** 2)
        total = total + 0.001 * (h_tv / (C * (H - 1) * W) + w_tv / (C * H * (W - 1))) / B
    if spectral_tv:
        c_tv = jnp.sum((y32[:, 1:, :, :] - y32[:, :-1, :, :]) ** 2)
        total = total + 0.001 * 2.0 * (c_tv / ((C - 1) * H * W)) / B
    return total


if __name__ == "__main__":
    key = jax.random.PRNGKey(0)
    ky, kg = jax.random.split(key)
    B, C, H, W = 2, 4, 16, 16
    y = jax.random.normal(ky, (B, C, H, W), dtype=jnp.float32)
    gt = jax.random.normal(kg, (B, C, H, W), dtype=jnp.float32)

    cases = [
        dict(spatial_tv=False, spectral_tv=False, tile_h=None),  # default: L1 only
        dict(spatial_tv=True,  spectral_tv=True,  tile_h=None),  # single H tile
        dict(spatial_tv=True,  spectral_tv=True,  tile_h=8),     # 2 H tiles -> carry path
        dict(spatial_tv=False, spectral_tv=False, tile_h=8),     # 2 H tiles, L1-only path
    ]
    for cfg in cases:
        out = hybrid_loss(y, gt, **cfg)
        out = jax.block_until_ready(out)
        ref = _reference(y, gt, spatial_tv=cfg["spatial_tv"],
                         spectral_tv=cfg["spectral_tv"])
        assert jnp.allclose(out, ref, rtol=1e-5, atol=1e-6), (cfg, out, ref)

    print("KERNEL_OK")
</pallas_src>

<mosaic_0001>
module attributes {stable_mosaic.version = 11 : i64} {
  func.func @kernel(%arg0: i32, %arg1: i32, %arg2: memref<1x4x16x16xf32, #tpu.memory_space<vmem>>, %arg3: memref<1x4x16x16xf32, #tpu.memory_space<vmem>>, %arg4: memref<1x4x16xf32, #tpu.memory_space<vmem>>) attributes {dimension_semantics = [#tpu.dimension_semantics<parallel>, #tpu.dimension_semantics<arbitrary>], iteration_bounds = array<i64: 2, 1>, scalar_prefetch = 0 : i64, scratch_operands = 0 : i64, tpu.core_type = #tpu.core_type<tc>, window_params = [{transform_indices = @transform_0, window_bounds = array<i64: 1, 4, 16, 16>}, {transform_indices = @transform_1, window_bounds = array<i64: 1, 4, 16, 16>}, {transform_indices = @transform_2, window_bounds = array<i64: 1, 4, 16>}]} {
    %c0_i32 = arith.constant 0 : i32
    %0 = arith.cmpi eq, %arg1, %c0_i32 : i32
    %1 = arith.extui %0 : i1 to i32
    %c0_i32_0 = arith.constant 0 : i32
    %2 = arith.cmpi ne, %1, %c0_i32_0 : i32
    scf.if %2 {
      %cst_14 = arith.constant 0.000000e+00 : f32
      %17 = vector.broadcast %cst_14 : f32 to vector<4x16xf32>
      %c0_15 = arith.constant 0 : index
      %c0_16 = arith.constant 0 : index
      %c0_17 = arith.constant 0 : index
      %18 = vector.load %arg4[%c0_15, %c0_16, %c0_17] : memref<1x4x16xf32, #tpu.memory_space<vmem>>, vector<1x4x16xf32>
      %19 = vector.shape_cast %18 : vector<1x4x16xf32> to vector<4x16xf32>
      %20 = vector.shape_cast %17 : vector<4x16xf32> to vector<1x4x16xf32>
      tpu.vector_store %arg4[%c0_15, %c0_16, %c0_17], %20 {strides = array<i32>} : memref<1x4x16xf32, #tpu.memory_space<vmem>>, vector<1x4x16xf32>,
    } else {
    }
    %c0 = arith.constant 0 : index
    %c0_1 = arith.constant 0 : index
    %c0_2 = arith.constant 0 : index
    %c0_3 = arith.constant 0 : index
    %3 = vector.load %arg2[%c0, %c0_1, %c0_2, %c0_3] : memref<1x4x16x16xf32, #tpu.memory_space<vmem>>, vector<1x4x16x16xf32>
    %4 = vector.shape_cast %3 : vector<1x4x16x16xf32> to vector<4x16x16xf32>
    %c0_4 = arith.constant 0 : index
    %c0_5 = arith.constant 0 : index
    %c0_6 = arith.constant 0 : index
    %c0_7 = arith.constant 0 : index
    %5 = vector.load %arg3[%c0_4, %c0_5, %c0_6, %c0_7] : memref<1x4x16x16xf32, #tpu.memory_space<vmem>>, vector<1x4x16x16xf32>
    %6 = vector.shape_cast %5 : vector<1x4x16x16xf32> to vector<4x16x16xf32>
    %7 = arith.subf %4, %6 : vector<4x16x16xf32>
    %8 = math.absf %7 : vector<4x16x16xf32>
    %cst = arith.constant dense<0.000000e+00> : vector<16xf32>
    %9 = vector.multi_reduction <add>, %8, %cst [0, 1] : vector<4x16x16xf32> to vector<16xf32>
    %c0_8 = arith.constant 0 : index
    %c0_9 = arith.constant 0 : index
    %c0_10 = arith.constant 0 : index
    %10 = vector.load %arg4[%c0_8, %c0_9, %c0_10] : memref<1x4x16xf32, #tpu.memory_space<vmem>>, vector<1x1x16xf32>
    %11 = vector.shape_cast %10 : vector<1x1x16xf32> to vector<1x16xf32>
    %12 = vector.shape_cast %9 : vector<16xf32> to vector<1x16xf32>
    %13 = arith.addf %11, %12 : vector<1x16xf32>
    %c0_11 = arith.constant 0 : index
    %c0_12 = arith.constant 0 : index
    %c0_13 = arith.constant 0 : index
    %14 = vector.load %arg4[%c0_11, %c0_12, %c0_13] : memref<1x4x16xf32, #tpu.memory_space<vmem>>, vector<1x1x16xf32>
    %15 = vector.shape_cast %14 : vector<1x1x16xf32> to vector<1x16xf32>
    %16 = vector.shape_cast %13 : vector<1x16xf32> to vector<1x1x16xf32>
    tpu.vector_store %arg4[%c0_11, %c0_12, %c0_13], %16 {strides = array<i32>} : memref<1x4x16xf32, #tpu.memory_space<vmem>>, vector<1x1x16xf32>,
    return
  }
  func.func @transform_0(%arg0: i32, %arg1: i32) -> (i32, i32, i32, i32) {
    %c0_i32 = arith.constant 0 : i32
    %c0_i32_0 = arith.constant 0 : i32
    %c0_i32_1 = arith.constant 0 : i32
    return %arg0, %c0_i32, %arg1, %c0_i32_0 : i32, i32, i32, i32
  }
  func.func @transform_1(%arg0: i32, %arg1: i32) -> (i32, i32, i32, i32) {
    %c0_i32 = arith.constant 0 : i32
    %c0_i32_0 = arith.constant 0 : i32
    %c0_i32_1 = arith.constant 0 : i32
    return %arg0, %c0_i32, %arg1, %c0_i32_0 : i32, i32, i32, i32
  }
  func.func @transform_2(%arg0: i32, %arg1: i32) -> (i32, i32, i32) {
    %c0_i32 = arith.constant 0 : i32
    %c0_i32_0 = arith.constant 0 : i32
    %c0_i32_1 = arith.constant 0 : i32
    return %arg0, %c0_i32, %c0_i32_0 : i32, i32, i32
  }
}

</mosaic_0001>

<llo_original>
// kernel: tpu_custom_call.1
$region0: #{tpu_custom_call.1}
  #allocation0 [shape = 'u32[]', space=smem, size = 0x4, offset = 0x4, fixed_abs, tag = 'smem constant byte address 0x4 - core index']
  #allocation1 [shape = 'u32[72,128]{1,0:T(1,128)}', space=vmem, size = 0x9000, scoped, tag = 'internal scratch']
  %s0 = inlined_call_operand.hbm [shape: f32[2,4,16,16], index: 0, kind: input, shape index: {}]
  %s1 = inlined_call_operand.hbm [shape: f32[2,4,16,16], index: 1, kind: input, shape index: {}]
  %s2 = inlined_call_operand.hbm [shape: f32[2,4,16], index: 2, kind: output, shape index: {}]
  %s3 = sld [smem:[#allocation0]]
  $region53: #{tpu_custom_call.1} parent=0
    _
  %s5 = ssub.s32 1, %s3
  %s6 = scalar_select 0, %s5, %s3
  $region1: #{tpu_custom_call.1} parent=0
    #allocation2 [shape = 'u8[65536]{0}', space=vmem, size = 0x10000, scoped, tag = 'input window, operand 0']
    #allocation3 [shape = 's32[2]{0}', space=sflag, size = 0x8, scoped, tag = 'scoped memory for tpu_custom_call.1']
    #allocation4 [shape = 's32[2]{0}', space=sflag, size = 0x8, scoped, tag = 'scoped memory for tpu_custom_call.1']
    #allocation5 [shape = 'u8[65536]{0}', space=vmem, size = 0x10000, scoped, tag = 'input window, operand 1']
    #allocation6 [shape = 's32[2]{0}', space=sflag, size = 0x8, scoped, tag = 'scoped memory for tpu_custom_call.1']
    #allocation7 [shape = 'u8[4096]{0}', space=vmem, size = 0x1000, scoped, tag = 'output window, operand 0']
    %7 = vsyncpa [#allocation3], 0
    %s8 = scalar_lea.sflag [#allocation3], 1
    %9 = vsyncpa %s8, 0
    %10 = vsyncpa [#allocation6], 0
    %s11 = scalar_lea.sflag [#allocation6], 1
    %12 = vsyncpa %s11, 0
    %13 = vsyncpa [#allocation4], 0
    %s14 = scalar_lea.sflag [#allocation4], 1
    %15 = vsyncpa %s14, 0
    loop: start=0, step=1, limit=4
    $region2: #{tpu_custom_call.1} parent=1 // loop_pre_header
      _
    $region3: #{tpu_custom_call.1} parent=1 // loop_header
      %s17 = sphi 0, %s21
      %p18 = scmp.ge.s32.totalorder %s17, 4
      %s24 = sphi 0, %s36
      %s25 = sphi 0, %s32
      %s26 = sphi 0, %s24
      %s27 = sphi 0, %s25
      %s28 = sphi 0, %s26
      %s29 = sphi 0, %s27
      %s41 = sphi 0, %s43
      %s44 = sphi 0, %s41
      %s45 = sphi 0, %s44
      %s61 = sphi 0, %s45
      %s69 = sphi 0, %s71
      %s72 = sphi 0, %s69
      %s73 = sphi 0, %s72
      %s89 = sphi 0, %s73
      %s95 = sphi 0, %s97
      %s98 = sphi 0, %s95
      %s99 = sphi 0, %s98
      %s115 = sphi 0, %s99
    $region4: #{tpu_custom_call.1} parent=1 // loop_header_branch
      %20 = sbr.rel (%p18) target = $region8
    $region5: #{tpu_custom_call.1} parent=1 // loop_body
      %s22 = ssub.s32 %s17, 1
      %s23 = ssub.s32 %s17, 2
      %s30 = sadd.s32 1, %s25
      %p31 = scmp.ge.s32.totalorder %s30, 1
      %s32 = scalar_select %p31, 0, %s30
      %s33 = sadd.s32 1, %s24
      %s34 = scalar_select %p31, %s33, %s24
      %p35 = scmp.ge.s32.totalorder %s34, 2
      %s36 = scalar_select %p35, 0, %s34
      %s37 = ssub.s32 %s24, %s36
      %s38 = ssub.s32 %s25, %s32
      %s39 = sor.u32 %s37, %s38
      %p40 = scmp.eq.s32.totalorder %s39, 0
      %s42 = sadd.s32 %s41, 1
      %s43 = scalar_select %p40, %s41, %s42
      %p46 = pneg %p40
      %p47 = scmp.eq.s32.totalorder %s17, 1
      %p48 = por %p46, %p47
      %p49 = scmp.ne.s32.totalorder %s41, %s44
      %p50 = scmp.eq.s32.totalorder %s17, 0
      %p51 = por %p49, %p50
      %p52 = scmp.ne.s32.totalorder %s41, %s44
      %p53 = scmp.eq.s32.totalorder %s22, 1
      %p54 = por %p52, %p53
      %p55 = scmp.ne.s32.totalorder %s44, %s45
      %p56 = scmp.eq.s32.totalorder %s22, 0
      %p57 = por %p55, %p56
      %p58 = scmp.ne.s32.totalorder %s44, %s45
      %p59 = scmp.eq.s32.totalorder %s23, 1
      %p60 = por %p58, %p59
      %p62 = scmp.ne.s32.totalorder %s45, %s61
      %p63 = scmp.eq.s32.totalorder %s23, 0
      %p64 = por %p62, %p63
      %s65 = ssub.s32 %s24, %s36
      %s66 = ssub.s32 %s25, %s32
      %s67 = sor.u32 %s65, %s66
      %p68 = scmp.eq.s32.totalorder %s67, 0
      %s70 = sadd.s32 %s69, 1
      %s71 = scalar_select %p68, %s69, %s70
      %p74 = pneg %p68
      %p75 = scmp.eq.s32.totalorder %s17, 1
      %p76 = por %p74, %p75
      %p77 = scmp.ne.s32.totalorder %s69, %s72
      %p78 = scmp.eq.s32.totalorder %s17, 0
      %p79 = por %p77, %p78
      %p80 = scmp.ne.s32.totalorder %s69, %s72
      %p81 = scmp.eq.s32.totalorder %s22, 1
      %p82 = por %p80, %p81
      %p83 = scmp.ne.s32.totalorder %s72, %s73
      %p84 = scmp.eq.s32.totalorder %s22, 0
      %p85 = por %p83, %p84
      %p86 = scmp.ne.s32.totalorder %s72, %s73
      %p87 = scmp.eq.s32.totalorder %s23, 1
      %p88 = por %p86, %p87
      %p90 = scmp.ne.s32.totalorder %s73, %s89
      %p91 = scmp.eq.s32.totalorder %s23, 0
      %p92 = por %p90, %p91
      %s93 = ssub.s32 %s24, %s36
      %p94 = scmp.eq.s32.totalorder %s93, 0
      %s96 = sadd.s32 %s95, 1
      %s97 = scalar_select %p94, %s95, %s96
      %p100 = pneg %p94
      %p101 = scmp.eq.s32.totalorder %s17, 1
      %p102 = por %p100, %p101
      %p103 = scmp.ne.s32.totalorder %s95, %s98
      %p104 = scmp.eq.s32.totalorder %s17, 0
      %p105 = por %p103, %p104
      %p106 = scmp.ne.s32.totalorder %s95, %s98
      %p107 = scmp.eq.s32.totalorder %s22, 1
      %p108 = por %p106, %p107
      %p109 = scmp.ne.s32.totalorder %s98, %s99
      %p110 = scmp.eq.s32.totalorder %s22, 0
      %p111 = por %p109, %p110
      %p112 = scmp.ne.s32.totalorder %s98, %s99
      %p113 = scmp.eq.s32.totalorder %s23, 1
      %p114 = por %p112, %p113
      %p116 = scmp.ne.s32.totalorder %s99, %s115
      %p117 = scmp.eq.s32.totalorder %s23, 0
      %p118 = por %p116, %p117
      %p119 = scmp.le.s32.totalorder 1, %s17
      %p120 = scmp.lt.s32.totalorder %s17, 3
      %p121 = pnand %p119, %p120
      %p122 = pneg %p121
      // Predicated region
      $region9: #{tpu_custom_call.1} parent=5 // pred_check
        _
      $region10: #{tpu_custom_call.1} parent=5 // pred_check_branch
        %124 = sbr.rel (%p121) target = $region12
      $region11: #{tpu_custom_call.1} parent=5 // pred_region
        %s125 = ssub.s32 %s17, 1
      $region12: #{tpu_custom_call.1} parent=5 // pred_fallthru
        _
      %p126 = scmp.lt.s32.totalorder %s17, 2
      // Predicated region
      $region13: #{tpu_custom_call.1} parent=5 // pred_check
        %p127 = pneg %p126
      $region14: #{tpu_custom_call.1} parent=5 // pred_check_branch
        %129 = sbr.rel (%p127) target = $region16
      $region15: #{tpu_custom_call.1} parent=5 // pred_region
        // Predicated region
        $region17: #{tpu_custom_call.1} parent=15 // pred_check
          %p130 = pneg %p51
        $region18: #{tpu_custom_call.1} parent=15 // pred_check_branch
          %132 = sbr.rel (%p130) target = $region20
        $region19: #{tpu_custom_call.1} parent=15 // pred_region
          %s133 = sand.u32 %s41, 1
          %s134 = scalar_lea.sflag [#allocation3], %s133
          %s135 = sand.u32 %s41, 1
          %s136 = smul.addr %s135, 64
          %s137 = scalar_lea.vmem [#allocation2], %s136
          %s138 = smul.u32 2, %s25
          %140 = vsyncadd %s134, 0
          %s141 = smul.addr %s24, 8
          %s142 = sadd.s32 %s138, %s141
          %s143 = smul.addr %s142, 8
          %s144 = scalar_lea.hbm %s0, %s143
          %s145 = sshll.u32 %s144, 4
          %s146 = int_to_ptr.hbm [resolvable:$true] %s145
          %s147 = sshll.u32 %s137, 4
          %s148 = int_to_ptr.vmem [resolvable:$true] %s147
          %153 = dma.hbm_to_vmem [thread:$0]  %s146, 1024, %s148, %s134, 128, 128, 8
        $region20: #{tpu_custom_call.1} parent=15 // pred_fallthru
          _
        // Predicated region
        $region21: #{tpu_custom_call.1} parent=15 // pred_check
          %p154 = pneg %p79
        $region22: #{tpu_custom_call.1} parent=15 // pred_check_branch
          %156 = sbr.rel (%p154) target = $region24
        $region23: #{tpu_custom_call.1} parent=15 // pred_region
          %s157 = sand.u32 %s69, 1
          %s158 = scalar_lea.sflag [#allocation6], %s157
          %s159 = sand.u32 %s69, 1
          %s160 = smul.addr %s159, 64
          %s161 = scalar_lea.vmem [#allocation5], %s160
          %s162 = smul.u32 2, %s25
          %164 = vsyncadd %s158, 0
          %s165 = smul.addr %s24, 8
          %s166 = sadd.s32 %s162, %s165
          %s167 = smul.addr %s166, 8
          %s168 = scalar_lea.hbm %s1, %s167
          %s169 = sshll.u32 %s168, 4
          %s170 = int_to_ptr.hbm [resolvable:$true] %s169
          %s171 = sshll.u32 %s161, 4
          %s172 = int_to_ptr.vmem [resolvable:$true] %s171
          %177 = dma.hbm_to_vmem [thread:$0]  %s170, 1024, %s172, %s158, 128, 128, 8
        $region24: #{tpu_custom_call.1} parent=15 // pred_fallthru
          _
      $region16: #{tpu_custom_call.1} parent=5 // pred_fallthru
        _
      %p178 = scmp.le.s32.totalorder 1, %s17
      %p179 = scmp.lt.s32.totalorder %s17, 3
      %p180 = pnand %p178, %p179
      %p181 = pneg %p180
      // Predicated region
      $region25: #{tpu_custom_call.1} parent=5 // pred_check
        _
      $region26: #{tpu_custom_call.1} parent=5 // pred_check_branch
        %183 = sbr.rel (%p180) target = $region28
      $region27: #{tpu_custom_call.1} parent=5 // pred_region
        %s184 = ssub.s32 %s17, 1
        %s185 = sand.u32 %s44, 1
        %s186 = scalar_lea.sflag [#allocation3], %s185
        %s187 = sand.u32 %s44, 1
        %s188 = smul.addr %s187, 64
        %s189 = scalar_lea.vmem [#allocation2], %s188
        // Predicated region
        $region29: #{tpu_custom_call.1} parent=27 // pred_check
          %p190 = pneg %p57
        $region30: #{tpu_custom_call.1} parent=27 // pred_check_branch
          %192 = sbr.rel (%p190) target = $region32
        $region31: #{tpu_custom_call.1} parent=27 // pred_region
          %194 = dma.done %s186, 1024
        $region32: #{tpu_custom_call.1} parent=27 // pred_fallthru
          _
        %s195 = sand.u32 %s72, 1
        %s196 = scalar_lea.sflag [#allocation6], %s195
        %s197 = sand.u32 %s72, 1
        %s198 = smul.addr %s197, 64
        %s199 = scalar_lea.vmem [#allocation5], %s198
        // Predicated region
        $region33: #{tpu_custom_call.1} parent=27 // pred_check
          %p200 = pneg %p85
        $region34: #{tpu_custom_call.1} parent=27 // pred_check_branch
          %202 = sbr.rel (%p200) target = $region36
        $region35: #{tpu_custom_call.1} parent=27 // pred_region
          %204 = dma.done %s196, 1024
        $region36: #{tpu_custom_call.1} parent=27 // pred_fallthru
          _
        %s205 = sand.u32 %s44, 1
        %s206 = scalar_lea.sflag [#allocation3], %s205
        %s207 = sand.u32 %s44, 1
        %s208 = smul.addr %s207, 64
        %s209 = scalar_lea.vmem [#allocation2], %s208
        %p210 = pneg %p57
        %p211 = pneg %p54
        %s212 = sand.u32 %s72, 1
        %s213 = scalar_lea.sflag [#allocation6], %s212
        %s214 = sand.u32 %s72, 1
        %s215 = smul.addr %s214, 64
        %s216 = scalar_lea.vmem [#allocation5], %s215
        %p217 = pneg %p85
        %p218 = pneg %p82
        %p219 = pneg %p111
        %p220 = pneg %p108
        %s221 = sand.u32 %s98, 1
        %s222 = scalar_lea.sflag [#allocation4], %s221
        %s223 = sand.u32 %s98, 1
        %s224 = smul.addr %s223, 4
        %s225 = scalar_lea.vmem [#allocation7], %s224
        %s226 = smul.u32 2, %s27
        %s227 = smul.u32 2, %s27
        %p228 = scmp.eq.s32.totalorder %s27, 0
        // Predicated region
        $region37: #{tpu_custom_call.1} parent=27 // pred_check
          %p229 = pneg %p228
        $region38: #{tpu_custom_call.1} parent=27 // pred_check_branch
          %231 = sbr.rel (%p229) target = $region40
        $region39: #{tpu_custom_call.1} parent=27 // pred_region
          %vm232 = vcmask 125952
          %233 = vst.msk [vmem:[%s225] sm:$0xf] %vm232, 0.0
        $region40: #{tpu_custom_call.1} parent=27 // pred_fallthru
          _
        %v234 = vld [vmem:[%s189] sm:$0xff]
        %v235 = vld [vmem:[%s189 + $0x8] sm:$0xff]
        %v236 = vld [vmem:[%s189 + $0x10] sm:$0xff]
        %v237 = vld [vmem:[%s189 + $0x18] sm:$0xff]
        %v238 = vld [vmem:[%s189 + $0x20] sm:$0xff]
        %v239 = vld [vmem:[%s189 + $0x28] sm:$0xff]
        %v240 = vld [vmem:[%s189 + $0x30] sm:$0xff]
        %v241 = vld [vmem:[%s189 + $0x38] sm:$0xff]
        %v242 = vld [vmem:[%s199] sm:$0xff]
        %v243 = vld [vmem:[%s199 + $0x8] sm:$0xff]
        %v244 = vld [vmem:[%s199 + $0x10] sm:$0xff]
        %v245 = vld [vmem:[%s199 + $0x18] sm:$0xff]
        %v246 = vld [vmem:[%s199 + $0x20] sm:$0xff]
        %v247 = vld [vmem:[%s199 + $0x28] sm:$0xff]
        %v248 = vld [vmem:[%s199 + $0x30] sm:$0xff]
        %v249 = vld [vmem:[%s199 + $0x38] sm:$0xff]
        %v250 = vsub.f32 %v234, %v242
        %v251 = vsub.f32 %v235, %v243
        %v252 = vsub.f32 %v236, %v244
        %v253 = vsub.f32 %v237, %v245
        %v254 = vsub.f32 %v238, %v246
        %v255 = vsub.f32 %v239, %v247
        %v256 = vsub.f32 %v240, %v248
        %v257 = vsub.f32 %v241, %v249
        %v258 = vand.u32 2147483647, %v250
        %v259 = vand.u32 2147483647, %v251
        %v260 = vand.u32 2147483647, %v252
        %v261 = vand.u32 2147483647, %v253
        %v262 = vand.u32 2147483647, %v254
        %v263 = vand.u32 2147483647, %v255
        %v264 = vand.u32 2147483647, %v256
        %v265 = vand.u32 2147483647, %v257
        %vm266 = vcmask 130048
        %v267 = vsel %vm266, %v258, 0.0
        %v268 = vsel %vm266, %v259, 0.0
        %v269 = vadd.f32 %v267, %v268
        %v270 = vsel %vm266, %v260, 0.0
        %v271 = vadd.f32 %v269, %v270
        %v272 = vsel %vm266, %v261, 0.0
        %v273 = vadd.f32 %v271, %v272
        %v274 = vsel %vm266, %v262, 0.0
        %v275 = vadd.f32 %v273, %v274
        %v276 = vsel %vm266, %v263, 0.0
        %v277 = vadd.f32 %v275, %v276
        %v278 = vsel %vm266, %v264, 0.0
        %v279 = vadd.f32 %v277, %v278
        %v280 = vsel %vm266, %v265, 0.0
        %v281 = vadd.f32 %v279, %v280
        %v282 = vrot.slane %v281, 4
        %v283 = vadd.f32 %v281, %v282
        %v284 = vrot.slane %v283, 2
        %v285 = vadd.f32 %v283, %v284
        %v286 = vrot.slane %v285, 1
        %v287 = vadd.f32 %v285, %v286
        %v288 = vld [vmem:[%s225] sm:$0x1]
        %v289 = vadd.f32 %v288, %v287
        %vm290 = vcmask 122880
        %291 = vst.msk [vmem:[%s225] sm:$0x1] %vm290, %v289
        %s292 = sand.u32 %s98, 1
        %s293 = scalar_lea.sflag [#allocation4], %s292
        %s294 = sand.u32 %s98, 1
        %s295 = smul.addr %s294, 4
        %s296 = scalar_lea.vmem [#allocation7], %s295
        // Predicated region
        $region41: #{tpu_custom_call.1} parent=27 // pred_check
          %p297 = pneg %p108
        $region42: #{tpu_custom_call.1} parent=27 // pred_check_branch
          %299 = sbr.rel (%p297) target = $region44
        $region43: #{tpu_custom_call.1} parent=27 // pred_region
          %301 = vsyncadd %s293, 0
          %s302 = smul.addr %s26, 4
          %s303 = scalar_lea.hbm %s2, %s302
          %s305 = sshll.u32 %s296, 4
          %s306 = int_to_ptr.vmem [resolvable:$true] %s305
          %s307 = sshll.u32 %s303, 4
          %s308 = int_to_ptr.hbm [resolvable:$true] %s307
          %310 = dma.vmem_to_hbm [thread:$0]  %s306, 64, %s308, %s293
        $region44: #{tpu_custom_call.1} parent=27 // pred_fallthru
          _
      $region28: #{tpu_custom_call.1} parent=5 // pred_fallthru
        _
      %p311 = scmp.le.s32.totalorder 2, %s17
      // Predicated region
      $region45: #{tpu_custom_call.1} parent=5 // pred_check
        %p312 = pneg %p311
      $region46: #{tpu_custom_call.1} parent=5 // pred_check_branch
        %314 = sbr.rel (%p312) target = $region48
      $region47: #{tpu_custom_call.1} parent=5 // pred_region
        %s315 = ssub.s32 %s17, 2
        // Predicated region
        $region49: #{tpu_custom_call.1} parent=47 // pred_check
          %p316 = pneg %p114
        $region50: #{tpu_custom_call.1} parent=47 // pred_check_branch
          %318 = sbr.rel (%p316) target = $region52
        $region51: #{tpu_custom_call.1} parent=47 // pred_region
          %s319 = sand.u32 %s99, 1
          %s320 = scalar_lea.sflag [#allocation4], %s319
          %s321 = sand.u32 %s99, 1
          %s322 = smul.addr %s321, 4
          %s323 = scalar_lea.vmem [#allocation7], %s322
          %325 = dma.done %s320, 64
        $region52: #{tpu_custom_call.1} parent=47 // pred_fallthru
          _
      $region48: #{tpu_custom_call.1} parent=5 // pred_fallthru
        _
    $region6: #{tpu_custom_call.1} parent=1 // loop_footer
      %s21 = sadd.s32 1, %s17
    $region7: #{tpu_custom_call.1} parent=1 // loop_footer_branch
      %16 = sbr.rel target = $region3
    $region8: #{tpu_custom_call.1} parent=1 // loop_exit
      _
    %326 = vsyncpa [#allocation3], 1
    %s327 = scalar_lea.sflag [#allocation3], 1
    %328 = vsyncpa %s327, 1
    %329 = vsyncpa [#allocation6], 1
    %s330 = scalar_lea.sflag [#allocation6], 1
    %331 = vsyncpa %s330, 1
    %332 = vsyncpa [#allocation4], 1
    %s333 = scalar_lea.sflag [#allocation4], 1
    %334 = vsyncpa %s333, 1

</llo_original>
